<compile_context>
chip_gen: v6e
topology: v6e:2x2x1
jax: 0.10.0
libtpu: 0.0.40
codegen_flags: <defaults>
</compile_context>

<pallas_src>
import functools

import jax
import jax.numpy as jnp
from jax.experimental import pallas as pl
from jax.experimental.pallas import tpu as pltpu


# ------------------------------- helpers ----------------------------------- #
def _round_up(x, m):
    return ((x + m - 1) // m) * m


def _vmem_cap_bytes():
    """Generation-aware VMEM request cap (leave headroom below physical VMEM)."""
    try:
        kind = jax.devices()[0].device_kind.lower()
    except Exception:  # pragma: no cover - defensive
        kind = ""
    if "v7" in kind:
        return 56 << 20          # 64 MiB physical; ~8 MiB headroom for compiler scratch
    if any(t in kind for t in ("v4", "v5", "v6")):
        return 100 << 20         # 128 MiB physical parts
    return 56 << 20              # unknown: conservative


@functools.lru_cache(maxsize=None)
def _single_buffered_weights_supported():
    """Probe once whether constant-index operands accept pl.Buffered(1)
    (single buffering). Falls back to default double-buffering if not."""
    def _probe_kernel(c_ref, o_ref):
        o_ref[...] = c_ref[...] * 2.0

    try:
        c = jnp.arange(8 * 128, dtype=jnp.float32).reshape(8, 128)
        out = pl.pallas_call(
            _probe_kernel,
            out_shape=jax.ShapeDtypeStruct((16, 128), jnp.float32),
            grid_spec=pltpu.PrefetchScalarGridSpec(
                num_scalar_prefetch=0,
                grid=(2,),
                in_specs=[pl.BlockSpec((8, 128), lambda i: (0, 0),
                                       pipeline_mode=pl.Buffered(1))],
                out_specs=pl.BlockSpec((8, 128), lambda i: (i, 0)),
            ),
        )(c)
        jax.block_until_ready(out)
        ok = bool(jnp.allclose(out[:8], 2.0 * c)) and bool(jnp.allclose(out[8:], 2.0 * c))
        return ok
    except Exception:
        return False


def _choose_tile_b(batch, max_tile=512):
    """Batch tile: big enough to feed the MXU, >=2 tiles when possible (v7x has 2 TCs),
    and chosen to minimize batch-padding waste."""
    if batch <= 8:
        return 8
    if batch <= 2 * max_tile:
        return _round_up(-(-batch // 2), 8)            # two (or few) balanced tiles
    best_t = max_tile
    best_pad = _round_up(batch, max_tile) - batch
    for t in (512, 448, 384, 320, 256):
        pad = _round_up(batch, t) - batch
        if pad < best_pad:
            best_t, best_pad = t, pad
    return best_t


def _plan_tiling(batch, n_in_w, n_mask_pad, h_pad, n_out_pad, vmem_cap,
                 weight_mult, force_tk=None):
    """Pick (tile_b, tk, n_in_pad, num_k). Single-K whenever the bf16 x tile fits the
    VMEM budget (w0 is always fully resident); otherwise balance K tiles to multiples
    of 128 minimizing padding."""
    tile_b = _choose_tile_b(batch)

    if force_tk is not None:
        tk = max(128, _round_up(int(force_tk), 128))
        if tk >= n_in_w:
            return tile_b, n_in_w, n_in_w, 1
        num_k = -(-n_in_w // tk)
        return tile_b, tk, tk * num_k, num_k

    bias_bytes = 4 * (n_mask_pad + 3 * h_pad + 2 * n_out_pad)
    weight_bytes = weight_mult * (
        2 * (n_in_w * n_mask_pad + n_mask_pad * h_pad + 2 * h_pad * h_pad
             + h_pad * 2 * n_out_pad) + bias_bytes)
    fixed = (weight_bytes
             + 2 * tile_b * (n_out_pad * 4 + 3 * n_out_pad * 4)   # eps + packed out (x2)
             + tile_b * n_mask_pad * 4                            # acc scratch (worst case)
             + tile_b * (h_pad + 5 * n_out_pad) * 4               # live intermediates
             + (4 << 20))                                         # slack
    x_budget = int(vmem_cap * 0.85) - fixed
    per_k_col = 2 * tile_b * 2                                    # bf16, double-buffered
    tk_fit = (x_budget // per_k_col) // 128 * 128 if x_budget > 0 else 0
    if tk_fit >= n_in_w:
        return tile_b, n_in_w, n_in_w, 1
    tk_fit = max(tk_fit, 128)
    num_k = -(-n_in_w // tk_fit)
    tk = _round_up(-(-n_in_w // num_k), 128)                      # balanced K tiles
    return tile_b, tk, tk * num_k, num_k


# ----------------------------- Pallas kernels ------------------------------- #
def _encoder_tail(a0, eps, w1_ref, b1_ref, w2_ref, b2_ref, w3_ref, b3_ref,
                  wmv_ref, bmv_ref, out_ref, n_out_pad):
    """From pre-activation of the masked layer to the packed [q_m | q_v | latent]."""
    cdt = w1_ref.dtype
    h = jnp.maximum(a0, 0.0)                                                   # head L0
    h = jnp.maximum(jnp.dot(h.astype(cdt), w1_ref[...],
                            preferred_element_type=jnp.float32) + b1_ref[...], 0.0)  # head L1
    h = jnp.maximum(jnp.dot(h.astype(cdt), w2_ref[...],
                            preferred_element_type=jnp.float32) + b2_ref[...], 0.0)  # shared L0
    h = jnp.maximum(jnp.dot(h.astype(cdt), w3_ref[...],
                            preferred_element_type=jnp.float32) + b3_ref[...], 0.0)  # shared L1

    # fused mean/var heads: one matmul over (H, 2*n_out_pad)
    mv = jnp.dot(h.astype(cdt), wmv_ref[...],
                 preferred_element_type=jnp.float32) + bmv_ref[...]
    q_m = mv[:, :n_out_pad]
    z = jnp.clip(mv[:, n_out_pad:], -4.0, 4.0)
    sqrt_qv = jnp.exp(z * 0.25)            # sqrt(q_v) = exp(z/4), single EUP exp

    # lane-dense packed stores (each 128-aligned, unmasked vst)
    out_ref[:, 0:n_out_pad] = q_m
    out_ref[:, n_out_pad:2 * n_out_pad] = sqrt_qv * sqrt_qv        # q_v = exp(z/2)
    out_ref[:, 2 * n_out_pad:3 * n_out_pad] = q_m + sqrt_qv * eps  # rsample


def _encoder_kernel_single_k(x_ref, eps_ref,
                             w0_ref, b0_ref, w1_ref, b1_ref,
                             w2_ref, b2_ref, w3_ref, b3_ref,
                             wmv_ref, bmv_ref,
                             out_ref, *, n_out_pad):
    """Single-K variant: no accumulator scratch, everything stays in registers."""
    a0 = jnp.dot(x_ref[...], w0_ref[...],
                 preferred_element_type=jnp.float32) + b0_ref[...]
    _encoder_tail(a0, eps_ref[...], w1_ref, b1_ref, w2_ref, b2_ref,
                  w3_ref, b3_ref, wmv_ref, bmv_ref, out_ref, n_out_pad)


def _encoder_kernel_multi_k(x_ref, eps_ref,
                            w0_ref, b0_ref, w1_ref, b1_ref,
                            w2_ref, b2_ref, w3_ref, b3_ref,
                            wmv_ref, bmv_ref,
                            out_ref, acc_ref, *, n_out_pad, tk):
    """K-tiled variant: only x is streamed over K; w0 is VMEM-resident and sliced."""
    k = pl.program_id(1)
    k_off = pl.multiple_of(k * tk, 128)
    part = jnp.dot(x_ref[...], w0_ref[pl.ds(k_off, tk), :],
                   preferred_element_type=jnp.float32)

    @pl.when(k == 0)
    def _assign():
        acc_ref[...] = part            # assign-on-first-k (no zero-init pass)

    @pl.when(k != 0)
    def _accumulate():
        acc_ref[...] = acc_ref[...] + part

    @pl.when(k == pl.num_programs(1) - 1)
    def _finalize():
        _encoder_tail(acc_ref[...] + b0_ref[...], eps_ref[...],
                      w1_ref, b1_ref, w2_ref, b2_ref, w3_ref, b3_ref,
                      wmv_ref, bmv_ref, out_ref, n_out_pad)


# -------------------------- parameter construction ------------------------- #
def _init_linear(key, fan_in, fan_out):
    """PyTorch nn.Linear default init: U(-1/sqrt(fan_in), 1/sqrt(fan_in)); W is (out, in)."""
    kw, kb = jax.random.split(key)
    bound = 1.0 / (float(fan_in) ** 0.5)
    w = jax.random.uniform(kw, (fan_out, fan_in), jnp.float32, -bound, bound)
    b = jax.random.uniform(kb, (fan_out,), jnp.float32, -bound, bound)
    return w, b


def _init_bn(key, n):
    """Deterministic, non-trivial BatchNorm1d state so the eval-mode fold is exercised."""
    k1, k2, k3, k4 = jax.random.split(key, 4)
    return {
        "gamma": jax.random.uniform(k1, (n,), jnp.float32, 0.5, 1.5),
        "beta": jax.random.normal(k2, (n,), jnp.float32) * 0.1,
        "mean": jax.random.normal(k3, (n,), jnp.float32) * 0.1,
        "var": jax.random.uniform(k4, (n,), jnp.float32, 0.5, 1.5),
    }


def init_multi_masked_encoder(key, n_heads, n_input_list, n_output, n_hidden, mask):
    """Raw (PyTorch-layout) parameters mirroring MultiMaskedEncoder.__init__."""
    n_mask = mask.shape[0]
    keys = iter(jax.random.split(key, 4 * n_heads + 8))
    params = {"mask": mask.astype(jnp.float32), "heads": []}
    for h in range(n_heads):
        w0, b0 = _init_linear(next(keys), n_input_list[h], n_mask)
        w1, b1 = _init_linear(next(keys), n_mask, n_hidden)
        params["heads"].append({
            "w0": w0, "b0": b0, "bn0": _init_bn(next(keys), n_mask),
            "w1": w1, "b1": b1, "bn1": _init_bn(next(keys), n_hidden),
        })
    params["w2"], params["b2"] = _init_linear(next(keys), n_hidden, n_hidden)
    params["bn2"] = _init_bn(next(keys), n_hidden)
    params["w3"], params["b3"] = _init_linear(next(keys), n_hidden, n_hidden)
    params["bn3"] = _init_bn(next(keys), n_hidden)
    params["wm"], params["bm"] = _init_linear(next(keys), n_hidden, n_output)
    params["wv"], params["bv"] = _init_linear(next(keys), n_hidden, n_output)
    return params


def fold_and_pack_params(raw, head_id, compute_dtype=jnp.bfloat16):
    """One-time prep: fold mask + eval-mode BN into W/b, transpose to (in, out),
    zero-pad to lane multiples of 128, fuse mean/var heads, cast weights to bf16."""
    mask = raw["mask"]                    # (n_mask, n_in)
    head = raw["heads"][head_id]
    n_mask, n_in = mask.shape
    n_hidden = raw["w2"].shape[0]
    n_output = raw["wm"].shape[0]

    n_in_pad = _round_up(n_in, 128)
    n_mask_pad = _round_up(n_mask, 128)
    h_pad = _round_up(n_hidden, 128)
    n_out_pad = _round_up(n_output, 128)

    def bn_fold(p, eps_bn=1e-3):
        s = p["gamma"] / jnp.sqrt(p["var"] + eps_bn)
        t = p["beta"] - p["mean"] * s
        return s, t

    def fold_linear_bn(w, b, bn):         # w is (out, in) torch layout
        s, t = bn_fold(bn)
        return w.T * s[None, :], b * s + t   # (in, out), (out,)

    def pad2(a, r, c):
        return jnp.pad(a, ((0, r - a.shape[0]), (0, c - a.shape[1])))

    def pad_row(b, c):
        return jnp.pad(b, (0, c - b.shape[0])).reshape(1, c)

    w0_eff, b0_eff = fold_linear_bn(head["w0"] * mask, head["b0"], head["bn0"])
    w1_eff, b1_eff = fold_linear_bn(head["w1"], head["b1"], head["bn1"])
    w2_eff, b2_eff = fold_linear_bn(raw["w2"], raw["b2"], raw["bn2"])
    w3_eff, b3_eff = fold_linear_bn(raw["w3"], raw["b3"], raw["bn3"])

    wmv = jnp.concatenate(
        [pad2(raw["wm"].T, h_pad, n_out_pad), pad2(raw["wv"].T, h_pad, n_out_pad)], axis=1)
    bmv = jnp.concatenate(
        [pad_row(raw["bm"], n_out_pad), pad_row(raw["bv"], n_out_pad)], axis=1)

    cd = compute_dtype
    return {
        "w0": pad2(w0_eff, n_in_pad, n_mask_pad).astype(cd),
        "b0": pad_row(b0_eff, n_mask_pad),
        "w1": pad2(w1_eff, n_mask_pad, h_pad).astype(cd),
        "b1": pad_row(b1_eff, h_pad),
        "w2": pad2(w2_eff, h_pad, h_pad).astype(cd),
        "b2": pad_row(b2_eff, h_pad),
        "w3": pad2(w3_eff, h_pad, h_pad).astype(cd),
        "b3": pad_row(b3_eff, h_pad),
        "wmv": wmv.astype(cd),
        "bmv": bmv,
    }


# ------------------------------- forward ------------------------------------ #
def _build_specs(tile_b, tk, n_in_pad, n_mask_pad, h_pad, n_out_pad, num_k,
                 single_buffer_weights):
    if num_k == 1:
        x_map = lambda i: (i, 0)
        c_map = lambda i: (0, 0)
        b_map = lambda i: (i, 0)
    else:
        x_map = lambda i, k: (i, k)
        c_map = lambda i, k: (0, 0)
        b_map = lambda i, k: (i, 0)

    pmode = pl.Buffered(1) if single_buffer_weights else None

    def const(shape):
        if pmode is None:
            return pl.BlockSpec(shape, c_map)
        return pl.BlockSpec(shape, c_map, pipeline_mode=pmode)

    in_specs = [
        pl.BlockSpec((tile_b, tk), x_map),                   # x (bf16, batch + K tiled)
        pl.BlockSpec((tile_b, n_out_pad), b_map),            # eps (batch tiled)
        const((n_in_pad, n_mask_pad)),                       # w0 (mask + BN folded, resident)
        const((1, n_mask_pad)),                              # b0
        const((n_mask_pad, h_pad)),                          # w1
        const((1, h_pad)),                                   # b1
        const((h_pad, h_pad)),                               # w2
        const((1, h_pad)),                                   # b2
        const((h_pad, h_pad)),                               # w3
        const((1, h_pad)),                                   # b3
        const((h_pad, 2 * n_out_pad)),                       # wmv (fused mean/var heads)
        const((1, 2 * n_out_pad)),                           # bmv
    ]
    out_spec = pl.BlockSpec((tile_b, 3 * n_out_pad), b_map)  # [q_m | q_v | latent]
    return in_specs, out_spec


@functools.partial(jax.jit,
                   static_argnames=("n_output", "force_tk", "single_buffer_weights"))
def _forward_impl(kparams, x, eps, *, n_output, force_tk, single_buffer_weights):
    batch, n_in = x.shape
    n_in_w, n_mask_pad = kparams["w0"].shape
    h_pad = kparams["w2"].shape[0]
    n_out_pad = kparams["wmv"].shape[1] // 2

    vmem_cap = _vmem_cap_bytes()
    weight_mult = 1 if single_buffer_weights else 2
    tile_b, tk, n_in_pad, num_k = _plan_tiling(
        batch, n_in_w, n_mask_pad, h_pad, n_out_pad, vmem_cap, weight_mult, force_tk)
    padded_batch = _round_up(batch, tile_b)
    num_b = padded_batch // tile_b

    # bf16 ingest for x: single cast + (optional) pad; no extra f32 copy.
    x_p = x.astype(jnp.bfloat16)
    if padded_batch != batch or n_in_pad != n_in:
        x_p = jnp.pad(x_p, ((0, padded_batch - batch), (0, n_in_pad - n_in)))
    eps_p = eps.astype(jnp.float32)
    if padded_batch != batch or n_out_pad != n_output:
        eps_p = jnp.pad(eps_p, ((0, padded_batch - batch), (0, n_out_pad - n_output)))
    w0 = kparams["w0"]
    if n_in_pad != n_in_w:                      # rare: re-pad K to num_k * tk
        w0 = jnp.pad(w0, ((0, n_in_pad - n_in_w), (0, 0)))

    # Advisory cost estimate for the XLA scheduler.
    bias_bytes = 4 * (n_mask_pad + 3 * h_pad + 2 * n_out_pad)
    weight_bytes = 2 * (n_in_pad * n_mask_pad + n_mask_pad * h_pad
                        + 2 * h_pad * h_pad + h_pad * 2 * n_out_pad) + bias_bytes
    flops = 2 * padded_batch * (n_in_pad * n_mask_pad + n_mask_pad * h_pad
                                + 2 * h_pad * h_pad + h_pad * 2 * n_out_pad)
    transcendentals = padded_batch * n_out_pad
    bytes_accessed = (weight_bytes
                      + padded_batch * n_in_pad * 2       # bf16 x
                      + padded_batch * n_out_pad * 4      # eps
                      + padded_batch * 3 * n_out_pad * 4)  # packed output
    cost = pl.CostEstimate(flops=int(flops), transcendentals=int(transcendentals),
                           bytes_accessed=int(bytes_accessed))

    # VMEM budget: resident (possibly single-buffered) weights + double-buffered
    # x/eps/output tiles + accumulator + live intermediates; generation-aware cap.
    tile_bytes = tile_b * (tk * 2 + n_out_pad * 4 + 3 * n_out_pad * 4)
    scratch_bytes = tile_b * n_mask_pad * 4 if num_k > 1 else 0
    live_bytes = tile_b * (h_pad + 5 * n_out_pad) * 4
    needed = weight_mult * weight_bytes + 2 * tile_bytes + scratch_bytes + live_bytes
    vmem_limit = int(min(max(int(needed * 1.25) + (2 << 20), 32 << 20), vmem_cap))

    in_specs, out_spec = _build_specs(tile_b, tk, n_in_pad, n_mask_pad, h_pad,
                                      n_out_pad, num_k, single_buffer_weights)

    if num_k == 1:
        kernel = functools.partial(_encoder_kernel_single_k, n_out_pad=n_out_pad)
        grid = (num_b,)
        dims = ("parallel",)
        scratch = []
    else:
        kernel = functools.partial(_encoder_kernel_multi_k, n_out_pad=n_out_pad, tk=tk)
        grid = (num_b, num_k)
        dims = ("parallel", "arbitrary")
        scratch = [pltpu.VMEM((tile_b, n_mask_pad), jnp.float32)]

    out = pl.pallas_call(
        kernel,
        out_shape=jax.ShapeDtypeStruct((padded_batch, 3 * n_out_pad), jnp.float32),
        grid_spec=pltpu.PrefetchScalarGridSpec(
            num_scalar_prefetch=0,
            grid=grid,
            in_specs=in_specs,
            out_specs=out_spec,
            scratch_shapes=scratch,
        ),
        compiler_params=pltpu.CompilerParams(
            dimension_semantics=dims,
            vmem_limit_bytes=vmem_limit,
        ),
        cost_estimate=cost,
    )(
        x_p, eps_p,
        w0, kparams["b0"],
        kparams["w1"], kparams["b1"],
        kparams["w2"], kparams["b2"],
        kparams["w3"], kparams["b3"],
        kparams["wmv"], kparams["bmv"],
    )

    q_m = out[:batch, 0:n_output]
    q_v = out[:batch, n_out_pad:n_out_pad + n_output]
    latent = out[:batch, 2 * n_out_pad:2 * n_out_pad + n_output]
    return q_m, q_v, latent


def multi_masked_encoder_forward(kparams, x, eps, *, n_output, force_tk=None):
    """Returns (q_m, q_v, latent), matching MultiMaskedEncoder.forward (eval mode)."""
    return _forward_impl(kparams, x, eps, n_output=n_output, force_tk=force_tk,
                         single_buffer_weights=_single_buffered_weights_supported())


# -------------------------- pure-JAX f32 reference -------------------------- #
def reference_forward(raw, x, eps, head_id):
    """Eval-mode reference (Dropout = identity, BN uses running stats, f32)."""
    def bn(h, p, eps_bn=1e-3):
        return (h - p["mean"]) / jnp.sqrt(p["var"] + eps_bn) * p["gamma"] + p["beta"]

    head = raw["heads"][head_id]
    h = x @ (head["w0"] * raw["mask"]).T + head["b0"]
    h = jnp.maximum(bn(h, head["bn0"]), 0.0)
    h = jnp.maximum(bn(h @ head["w1"].T + head["b1"], head["bn1"]), 0.0)
    h = jnp.maximum(bn(h @ raw["w2"].T + raw["b2"], raw["bn2"]), 0.0)
    h = jnp.maximum(bn(h @ raw["w3"].T + raw["b3"], raw["bn3"]), 0.0)
    q_m = h @ raw["wm"].T + raw["bm"]
    q_v = jnp.exp(jnp.clip(h @ raw["wv"].T + raw["bv"], -4.0, 4.0) / 2.0)
    latent = q_m + jnp.sqrt(q_v) * eps
    return q_m, q_v, latent


def _check(a, b, name):
    assert bool(jnp.allclose(a, b, atol=1e-1, rtol=1e-1)), f"mismatch in {name}"


# ---------------------------------- main ----------------------------------- #
if __name__ == "__main__":
    key = jax.random.PRNGKey(0)

    # ---------------- test 1: small, single-K path, single batch tile -------- #
    n_heads, n_in, n_mask, n_hidden, n_output, batch = 2, 16, 16, 32, 8, 8
    k_mask, k_params, k_x, k_eps, key = jax.random.split(key, 5)

    mask = jax.random.bernoulli(k_mask, 0.5, (n_mask, n_in)).astype(jnp.float32)
    raw = init_multi_masked_encoder(k_params, n_heads, [n_in, n_in],
                                    n_output, n_hidden, mask)
    kparams = fold_and_pack_params(raw, head_id=0)

    x = jax.random.normal(k_x, (batch, n_in), jnp.float32)
    eps = jax.random.normal(k_eps, (batch, n_output), jnp.float32)  # rsample noise

    q_m, q_v, latent = multi_masked_encoder_forward(kparams, x, eps, n_output=n_output)
    jax.block_until_ready((q_m, q_v, latent))
    r_m, r_v, r_lat = reference_forward(raw, x, eps, head_id=0)

    assert q_m.shape == (batch, n_output)
    assert q_v.shape == (batch, n_output)
    assert latent.shape == (batch, n_output)
    assert bool(jnp.all(q_v > 0.0))
    # bf16 MXU inputs vs f32 reference -> loose tolerance
    _check(q_m, r_m, "q_m")
    _check(q_v, r_v, "q_v")
    _check(latent, r_lat, "latent")

    # -------- test 2: forces K-tiled variant + two batch tiles (megacore) ---- #
    n_in2, batch2 = 256, 16
    k_mask2, k_params2, k_x2, k_eps2, key = jax.random.split(key, 5)
    mask2 = jax.random.bernoulli(k_mask2, 0.5, (n_mask, n_in2)).astype(jnp.float32)
    raw2 = init_multi_masked_encoder(k_params2, 1, [n_in2], n_output, n_hidden, mask2)
    kparams2 = fold_and_pack_params(raw2, head_id=0)

    x2 = jax.random.normal(k_x2, (batch2, n_in2), jnp.float32)
    eps2 = jax.random.normal(k_eps2, (batch2, n_output), jnp.float32)

    q_m2, q_v2, lat2 = multi_masked_encoder_forward(
        kparams2, x2, eps2, n_output=n_output, force_tk=128)   # -> num_k=2, num_b=2
    jax.block_until_ready((q_m2, q_v2, lat2))
    r_m2, r_v2, r_lat2 = reference_forward(raw2, x2, eps2, head_id=0)

    assert q_m2.shape == (batch2, n_output)
    assert bool(jnp.all(q_v2 > 0.0))
    _check(q_m2, r_m2, "q_m (k-tiled)")
    _check(q_v2, r_v2, "q_v (k-tiled)")
    _check(lat2, r_lat2, "latent (k-tiled)")

    print("KERNEL_OK")
</pallas_src>

<mosaic_0001>
module attributes {stable_mosaic.version = 11 : i64} {
  func.func @_probe_kernel(%arg0: i32, %arg1: memref<8x128xf32, #tpu.memory_space<vmem>>, %arg2: memref<8x128xf32, #tpu.memory_space<vmem>>) attributes {dimension_semantics = [#tpu.dimension_semantics<arbitrary>], iteration_bounds = array<i64: 2>, scalar_prefetch = 0 : i64, scratch_operands = 0 : i64, tpu.core_type = #tpu.core_type<tc>, window_params = [{pipeline_mode = #tpu.pipeline_mode<synchronous>, transform_indices = @transform_0, window_bounds = array<i64: 8, 128>}, {transform_indices = @transform_1, window_bounds = array<i64: 8, 128>}]} {
    %c0 = arith.constant 0 : index
    %c0_0 = arith.constant 0 : index
    %0 = vector.load %arg1[%c0, %c0_0] : memref<8x128xf32, #tpu.memory_space<vmem>>, vector<8x128xf32>
    %cst = arith.constant 2.000000e+00 : f32
    %1 = vector.broadcast %cst : f32 to vector<8x128xf32>
    %2 = arith.mulf %0, %1 : vector<8x128xf32>
    %c0_1 = arith.constant 0 : index
    %c0_2 = arith.constant 0 : index
    %3 = vector.load %arg2[%c0_1, %c0_2] : memref<8x128xf32, #tpu.memory_space<vmem>>, vector<8x128xf32>
    tpu.vector_store %arg2[%c0_1, %c0_2], %2 {strides = array<i32>} : memref<8x128xf32, #tpu.memory_space<vmem>>, vector<8x128xf32>,
    return
  }
  func.func @transform_0(%arg0: i32) -> (i32, i32) {
    %c0_i32 = arith.constant 0 : i32
    %c0_i32_0 = arith.constant 0 : i32
    %c0_i32_1 = arith.constant 0 : i32
    return %c0_i32, %c0_i32_0 : i32, i32
  }
  func.func @transform_1(%arg0: i32) -> (i32, i32) {
    %c0_i32 = arith.constant 0 : i32
    %c0_i32_0 = arith.constant 0 : i32
    return %arg0, %c0_i32 : i32, i32
  }
}

module attributes {stable_mosaic.version = 11 : i64} {
  func.func @_encoder_kernel_single_k(%arg0: i32, %arg1: memref<8x128xbf16, #tpu.memory_space<vmem>>, %arg2: memref<8x128xf32, #tpu.memory_space<vmem>>, %arg3: memref<128x128xbf16, #tpu.memory_space<vmem>>, %arg4: memref<1x128xf32, #tpu.memory_space<vmem>>, %arg5: memref<128x128xbf16, #tpu.memory_space<vmem>>, %arg6: memref<1x128xf32, #tpu.memory_space<vmem>>, %arg7: memref<128x128xbf16, #tpu.memory_space<vmem>>, %arg8: memref<1x128xf32, #tpu.memory_space<vmem>>, %arg9: memref<128x128xbf16, #tpu.memory_space<vmem>>, %arg10: memref<1x128xf32, #tpu.memory_space<vmem>>, %arg11: memref<128x256xbf16, #tpu.memory_space<vmem>>, %arg12: memref<1x256xf32, #tpu.memory_space<vmem>>, %arg13: memref<8x384xf32, #tpu.memory_space<vmem>>) attributes {dimension_semantics = [#tpu.dimension_semantics<parallel>], iteration_bounds = array<i64: 1>, scalar_prefetch = 0 : i64, scratch_operands = 0 : i64, tpu.core_type = #tpu.core_type<tc>, window_params = [{transform_indices = @transform_0, window_bounds = array<i64: 8, 128>}, {transform_indices = @transform_1, window_bounds = array<i64: 8, 128>}, {pipeline_mode = #tpu.pipeline_mode<synchronous>, transform_indices = @transform_2, window_bounds = array<i64: 128, 128>}, {pipeline_mode = #tpu.pipeline_mode<synchronous>, transform_indices = @transform_3, window_bounds = array<i64: 1, 128>}, {pipeline_mode = #tpu.pipeline_mode<synchronous>, transform_indices = @transform_4, window_bounds = array<i64: 128, 128>}, {pipeline_mode = #tpu.pipeline_mode<synchronous>, transform_indices = @transform_5, window_bounds = array<i64: 1, 128>}, {pipeline_mode = #tpu.pipeline_mode<synchronous>, transform_indices = @transform_6, window_bounds = array<i64: 128, 128>}, {pipeline_mode = #tpu.pipeline_mode<synchronous>, transform_indices = @transform_7, window_bounds = array<i64: 1, 128>}, {pipeline_mode = #tpu.pipeline_mode<synchronous>, transform_indices = @transform_8, window_bounds = array<i64: 128, 128>}, {pipeline_mode = #tpu.pipeline_mode<synchronous>, transform_indices = @transform_9, window_bounds = array<i64: 1, 128>}, {pipeline_mode = #tpu.pipeline_mode<synchronous>, transform_indices = @transform_10, window_bounds = array<i64: 128, 256>}, {pipeline_mode = #tpu.pipeline_mode<synchronous>, transform_indices = @transform_11, window_bounds = array<i64: 1, 256>}, {transform_indices = @transform_12, window_bounds = array<i64: 8, 384>}]} {
    %c0 = arith.constant 0 : index
    %c0_0 = arith.constant 0 : index
    %0 = vector.load %arg1[%c0, %c0_0] : memref<8x128xbf16, #tpu.memory_space<vmem>>, vector<8x128xbf16>
    %c0_1 = arith.constant 0 : index
    %c0_2 = arith.constant 0 : index
    %1 = vector.load %arg3[%c0_1, %c0_2] : memref<128x128xbf16, #tpu.memory_space<vmem>>, vector<128x128xbf16>
    %cst = arith.constant dense<0.000000e+00> : vector<8x128xf32>
    %2 = tpu.matmul %0, %1, %cst {dimension_numbers = #tpu.dot_dimension_numbers<[1], [0], [0], [1], [0, 0, 1, 1], [], []>} : vector<8x128xbf16>, vector<128x128xbf16>, vector<8x128xf32> -> vector<8x128xf32>
    %c0_3 = arith.constant 0 : index
    %c0_4 = arith.constant 0 : index
    %3 = vector.load %arg4[%c0_3, %c0_4] : memref<1x128xf32, #tpu.memory_space<vmem>>, vector<1x128xf32>
    %4 = vector.broadcast %3 : vector<1x128xf32> to vector<8x128xf32>
    %5 = arith.addf %2, %4 : vector<8x128xf32>
    %c0_5 = arith.constant 0 : index
    %c0_6 = arith.constant 0 : index
    %6 = vector.load %arg2[%c0_5, %c0_6] : memref<8x128xf32, #tpu.memory_space<vmem>>, vector<8x128xf32>
    %cst_7 = arith.constant 0.000000e+00 : f32
    %7 = vector.broadcast %cst_7 : f32 to vector<8x128xf32>
    %8 = arith.maximumf %5, %7 : vector<8x128xf32>
    %9 = arith.truncf %8 : vector<8x128xf32> to vector<8x128xbf16>
    %c0_8 = arith.constant 0 : index
    %c0_9 = arith.constant 0 : index
    %10 = vector.load %arg5[%c0_8, %c0_9] : memref<128x128xbf16, #tpu.memory_space<vmem>>, vector<128x128xbf16>
    %cst_10 = arith.constant dense<0.000000e+00> : vector<8x128xf32>
    %11 = tpu.matmul %9, %10, %cst_10 {dimension_numbers = #tpu.dot_dimension_numbers<[1], [0], [0], [1], [0, 0, 1, 1], [], []>} : vector<8x128xbf16>, vector<128x128xbf16>, vector<8x128xf32> -> vector<8x128xf32>
    %c0_11 = arith.constant 0 : index
    %c0_12 = arith.constant 0 : index
    %12 = vector.load %arg6[%c0_11, %c0_12] : memref<1x128xf32, #tpu.memory_space<vmem>>, vector<1x128xf32>
    %13 = vector.broadcast %12 : vector<1x128xf32> to vector<8x128xf32>
    %14 = arith.addf %11, %13 : vector<8x128xf32>
    %cst_13 = arith.constant 0.000000e+00 : f32
    %15 = vector.broadcast %cst_13 : f32 to vector<8x128xf32>
    %16 = arith.maximumf %14, %15 : vector<8x128xf32>
    %17 = arith.truncf %16 : vector<8x128xf32> to vector<8x128xbf16>
    %c0_14 = arith.constant 0 : index
    %c0_15 = arith.constant 0 : index
    %18 = vector.load %arg7[%c0_14, %c0_15] : memref<128x128xbf16, #tpu.memory_space<vmem>>, vector<128x128xbf16>
    %cst_16 = arith.constant dense<0.000000e+00> : vector<8x128xf32>
    %19 = tpu.matmul %17, %18, %cst_16 {dimension_numbers = #tpu.dot_dimension_numbers<[1], [0], [0], [1], [0, 0, 1, 1], [], []>} : vector<8x128xbf16>, vector<128x128xbf16>, vector<8x128xf32> -> vector<8x128xf32>
    %c0_17 = arith.constant 0 : index
    %c0_18 = arith.constant 0 : index
    %20 = vector.load %arg8[%c0_17, %c0_18] : memref<1x128xf32, #tpu.memory_space<vmem>>, vector<1x128xf32>
    %21 = vector.broadcast %20 : vector<1x128xf32> to vector<8x128xf32>
    %22 = arith.addf %19, %21 : vector<8x128xf32>
    %cst_19 = arith.constant 0.000000e+00 : f32
    %23 = vector.broadcast %cst_19 : f32 to vector<8x128xf32>
    %24 = arith.maximumf %22, %23 : vector<8x128xf32>
    %25 = arith.truncf %24 : vector<8x128xf32> to vector<8x128xbf16>
    %c0_20 = arith.constant 0 : index
    %c0_21 = arith.constant 0 : index
    %26 = vector.load %arg9[%c0_20, %c0_21] : memref<128x128xbf16, #tpu.memory_space<vmem>>, vector<128x128xbf16>
    %cst_22 = arith.constant dense<0.000000e+00> : vector<8x128xf32>
    %27 = tpu.matmul %25, %26, %cst_22 {dimension_numbers = #tpu.dot_dimension_numbers<[1], [0], [0], [1], [0, 0, 1, 1], [], []>} : vector<8x128xbf16>, vector<128x128xbf16>, vector<8x128xf32> -> vector<8x128xf32>
    %c0_23 = arith.constant 0 : index
    %c0_24 = arith.constant 0 : index
    %28 = vector.load %arg10[%c0_23, %c0_24] : memref<1x128xf32, #tpu.memory_space<vmem>>, vector<1x128xf32>
    %29 = vector.broadcast %28 : vector<1x128xf32> to vector<8x128xf32>
    %30 = arith.addf %27, %29 : vector<8x128xf32>
    %cst_25 = arith.constant 0.000000e+00 : f32
    %31 = vector.broadcast %cst_25 : f32 to vector<8x128xf32>
    %32 = arith.maximumf %30, %31 : vector<8x128xf32>
    %33 = arith.truncf %32 : vector<8x128xf32> to vector<8x128xbf16>
    %c0_26 = arith.constant 0 : index
    %c0_27 = arith.constant 0 : index
    %34 = vector.load %arg11[%c0_26, %c0_27] : memref<128x256xbf16, #tpu.memory_space<vmem>>, vector<128x256xbf16>
    %cst_28 = arith.constant dense<0.000000e+00> : vector<8x256xf32>
    %35 = tpu.matmul %33, %34, %cst_28 {dimension_numbers = #tpu.dot_dimension_numbers<[1], [0], [0], [1], [0, 0, 1, 1], [], []>} : vector<8x128xbf16>, vector<128x256xbf16>, vector<8x256xf32> -> vector<8x256xf32>
    %c0_29 = arith.constant 0 : index
    %c0_30 = arith.constant 0 : index
    %36 = vector.load %arg12[%c0_29, %c0_30] : memref<1x256xf32, #tpu.memory_space<vmem>>, vector<1x256xf32>
    %37 = vector.broadcast %36 : vector<1x256xf32> to vector<8x256xf32>
    %38 = arith.addf %35, %37 : vector<8x256xf32>
    %39 = vector.extract_strided_slice %38 {offsets = [0, 0], sizes = [8, 128], strides = [1, 1]} : vector<8x256xf32> to vector<8x128xf32>
    %40 = vector.extract_strided_slice %38 {offsets = [0, 128], sizes = [8, 128], strides = [1, 1]} : vector<8x256xf32> to vector<8x128xf32>
    %cst_31 = arith.constant -4.000000e+00 : f32
    %cst_32 = arith.constant 4.000000e+00 : f32
    %41 = vector.broadcast %cst_31 : f32 to vector<8x128xf32>
    %42 = arith.maximumf %41, %40 : vector<8x128xf32>
    %43 = vector.broadcast %cst_32 : f32 to vector<8x128xf32>
    %44 = arith.minimumf %43, %42 : vector<8x128xf32>
    %cst_33 = arith.constant 2.500000e-01 : f32
    %45 = vector.broadcast %cst_33 : f32 to vector<8x128xf32>
    %46 = arith.mulf %44, %45 : vector<8x128xf32>
    %47 = math.exp %46 : vector<8x128xf32>
    %c0_34 = arith.constant 0 : index
    %c0_35 = arith.constant 0 : index
    %48 = vector.load %arg13[%c0_34, %c0_35] : memref<8x384xf32, #tpu.memory_space<vmem>>, vector<8x128xf32>
    tpu.vector_store %arg13[%c0_34, %c0_35], %39 {strides = array<i32>} : memref<8x384xf32, #tpu.memory_space<vmem>>, vector<8x128xf32>,
    %49 = arith.mulf %47, %47 : vector<8x128xf32>
    %c0_36 = arith.constant 0 : index
    %c128 = arith.constant 128 : index
    %50 = vector.load %arg13[%c0_36, %c128] : memref<8x384xf32, #tpu.memory_space<vmem>>, vector<8x128xf32>
    tpu.vector_store %arg13[%c0_36, %c128], %49 {strides = array<i32>} : memref<8x384xf32, #tpu.memory_space<vmem>>, vector<8x128xf32>,
    %51 = arith.mulf %47, %6 : vector<8x128xf32>
    %52 = arith.addf %39, %51 : vector<8x128xf32>
    %c0_37 = arith.constant 0 : index
    %c256 = arith.constant 256 : index
    %53 = vector.load %arg13[%c0_37, %c256] : memref<8x384xf32, #tpu.memory_space<vmem>>, vector<8x128xf32>
    tpu.vector_store %arg13[%c0_37, %c256], %52 {strides = array<i32>} : memref<8x384xf32, #tpu.memory_space<vmem>>, vector<8x128xf32>,
    return
  }
  func.func @transform_0(%arg0: i32) -> (i32, i32) {
    %c0_i32 = arith.constant 0 : i32
    %c0_i32_0 = arith.constant 0 : i32
    return %arg0, %c0_i32 : i32, i32
  }
  func.func @transform_1(%arg0: i32) -> (i32, i32) {
    %c0_i32 = arith.constant 0 : i32
    %c0_i32_0 = arith.constant 0 : i32
    return %arg0, %c0_i32 : i32, i32
  }
  func.func @transform_2(%arg0: i32) -> (i32, i32) {
    %c0_i32 = arith.constant 0 : i32
    %c0_i32_0 = arith.constant 0 : i32
    %c0_i32_1 = arith.constant 0 : i32
    return %c0_i32, %c0_i32_0 : i32, i32
  }
  func.func @transform_3(%arg0: i32) -> (i32, i32) {
    %c0_i32 = arith.constant 0 : i32
    %c0_i32_0 = arith.constant 0 : i32
    %c0_i32_1 = arith.constant 0 : i32
    return %c0_i32, %c0_i32_0 : i32, i32
  }
  func.func @transform_4(%arg0: i32) -> (i32, i32) {
    %c0_i32 = arith.constant 0 : i32
    %c0_i32_0 = arith.constant 0 : i32
    %c0_i32_1 = arith.constant 0 : i32
    return %c0_i32, %c0_i32_0 : i32, i32
  }
  func.func @transform_5(%arg0: i32) -> (i32, i32) {
    %c0_i32 = arith.constant 0 : i32
    %c0_i32_0 = arith.constant 0 : i32
    %c0_i32_1 = arith.constant 0 : i32
    return %c0_i32, %c0_i32_0 : i32, i32
  }
  func.func @transform_6(%arg0: i32) -> (i32, i32) {
    %c0_i32 = arith.constant 0 : i32
    %c0_i32_0 = arith.constant 0 : i32
    %c0_i32_1 = arith.constant 0 : i32
    return %c0_i32, %c0_i32_0 : i32, i32
  }
  func.func @transform_7(%arg0: i32) -> (i32, i32) {
    %c0_i32 = arith.constant 0 : i32
    %c0_i32_0 = arith.constant 0 : i32
    %c0_i32_1 = arith.constant 0 : i32
    return %c0_i32, %c0_i32_0 : i32, i32
  }
  func.func @transform_8(%arg0: i32) -> (i32, i32) {
    %c0_i32 = arith.constant 0 : i32
    %c0_i32_0 = arith.constant 0 : i32
    %c0_i32_1 = arith.constant 0 : i32
    return %c0_i32, %c0_i32_0 : i32, i32
  }
  func.func @transform_9(%arg0: i32) -> (i32, i32) {
    %c0_i32 = arith.constant 0 : i32
    %c0_i32_0 = arith.constant 0 : i32
    %c0_i32_1 = arith.constant 0 : i32
    return %c0_i32, %c0_i32_0 : i32, i32
  }
  func.func @transform_10(%arg0: i32) -> (i32, i32) {
    %c0_i32 = arith.constant 0 : i32
    %c0_i32_0 = arith.constant 0 : i32
    %c0_i32_1 = arith.constant 0 : i32
    return %c0_i32, %c0_i32_0 : i32, i32
  }
  func.func @transform_11(%arg0: i32) -> (i32, i32) {
    %c0_i32 = arith.constant 0 : i32
    %c0_i32_0 = arith.constant 0 : i32
    %c0_i32_1 = arith.constant 0 : i32
    return %c0_i32, %c0_i32_0 : i32, i32
  }
  func.func @transform_12(%arg0: i32) -> (i32, i32) {
    %c0_i32 = arith.constant 0 : i32
    %c0_i32_0 = arith.constant 0 : i32
    return %arg0, %c0_i32 : i32, i32
  }
}

</mosaic_0001>

<llo_original>
// kernel: tpu_custom_call.1
$region0: #{tpu_custom_call.1}
  #allocation0 [shape = 'u32[]', space=smem, size = 0x4, offset = 0x4, fixed_abs, tag = 'smem constant byte address 0x4 - core index']
  #allocation1 [shape = 'u32[144,128]{1,0:T(1,128)}', space=vmem, size = 0x12000, scoped, tag = 'internal scratch']
  %s0 = inlined_call_operand.hbm [shape: f32[8,128], index: 0, kind: input, shape index: {}]
  %s1 = inlined_call_operand.hbm [shape: f32[16,128], index: 1, kind: output, shape index: {}]
  %s2 = sld [smem:[#allocation0]]
  $region41: #{tpu_custom_call.1} parent=0
    _
  %s4 = ssub.s32 1, %s2
  %s5 = scalar_select 0, %s4, %s2
  $region1: #{tpu_custom_call.1} parent=0
    #allocation2 [shape = 'u8[4096]{0}', space=vmem, size = 0x1000, scoped, tag = 'input window, operand 0, single buffered']
    #allocation3 [shape = 's32[2]{0}', space=sflag, size = 0x8, scoped, tag = 'scoped memory for tpu_custom_call.1']
    #allocation4 [shape = 's32[2]{0}', space=sflag, size = 0x8, scoped, tag = 'scoped memory for tpu_custom_call.1']
    #allocation5 [shape = 'u8[8192]{0}', space=vmem, size = 0x2000, scoped, tag = 'output window, operand 0']
    %6 = vsyncpa [#allocation3], 0
    %7 = vsyncpa [#allocation4], 0
    %s8 = scalar_lea.sflag [#allocation4], 1
    %9 = vsyncpa %s8, 0
    loop: start=0, step=1, limit=4
    $region2: #{tpu_custom_call.1} parent=1 // loop_pre_header
      _
    $region3: #{tpu_custom_call.1} parent=1 // loop_header
      %s11 = sphi 0, %s15
      %p12 = scmp.ge.s32.totalorder %s11, 4
      %s19 = sphi 0, %s19
      %s21 = sphi 0, %s19
      %s22 = sphi 0, %s21
      %s36 = sphi 0, %s22
      %s42 = sphi 0, %s44
      %s45 = sphi 0, %s42
      %s46 = sphi 0, %s45
      %s62 = sphi 0, %s46
    $region4: #{tpu_custom_call.1} parent=1 // loop_header_branch
      %14 = sbr.rel (%p12) target = $region8
    $region5: #{tpu_custom_call.1} parent=1 // loop_body
      %s16 = ssub.s32 %s11, 1
      %s17 = ssub.s32 %s11, 2
      %s18 = sadd.s32 %s11, 1
      %s20 = sadd.s32 %s19, 1
      %p23 = scmp.eq.s32.totalorder %s11, 1
      %p24 = scmp.ne.s32.totalorder %s19, %s21
      %p25 = scmp.eq.s32.totalorder %s11, 0
      %p26 = por %p24, %p25
      %p27 = scmp.ne.s32.totalorder %s19, %s21
      %p28 = scmp.eq.s32.totalorder %s16, 1
      %p29 = por %p27, %p28
      %p30 = scmp.ne.s32.totalorder %s21, %s22
      %p31 = scmp.eq.s32.totalorder %s16, 0
      %p32 = por %p30, %p31
      %p33 = scmp.ne.s32.totalorder %s21, %s22
      %p34 = scmp.eq.s32.totalorder %s17, 1
      %p35 = por %p33, %p34
      %p37 = scmp.ne.s32.totalorder %s22, %s36
      %p38 = scmp.eq.s32.totalorder %s17, 0
      %p39 = por %p37, %p38
      %s40 = ssub.s32 %s11, %s18
      %p41 = scmp.eq.s32.totalorder %s40, 0
      %s43 = sadd.s32 %s42, 1
      %s44 = scalar_select %p41, %s42, %s43
      %p47 = pneg %p41
      %p48 = scmp.eq.s32.totalorder %s11, 1
      %p49 = por %p47, %p48
      %p50 = scmp.ne.s32.totalorder %s42, %s45
      %p51 = scmp.eq.s32.totalorder %s11, 0
      %p52 = por %p50, %p51
      %p53 = scmp.ne.s32.totalorder %s42, %s45
      %p54 = scmp.eq.s32.totalorder %s16, 1
      %p55 = por %p53, %p54
      %p56 = scmp.ne.s32.totalorder %s45, %s46
      %p57 = scmp.eq.s32.totalorder %s16, 0
      %p58 = por %p56, %p57
      %p59 = scmp.ne.s32.totalorder %s45, %s46
      %p60 = scmp.eq.s32.totalorder %s17, 1
      %p61 = por %p59, %p60
      %p63 = scmp.ne.s32.totalorder %s46, %s62
      %p64 = scmp.eq.s32.totalorder %s17, 0
      %p65 = por %p63, %p64
      %p66 = scmp.le.s32.totalorder 1, %s11
      %p67 = scmp.lt.s32.totalorder %s11, 3
      %p68 = pnand %p66, %p67
      %p69 = pneg %p68
      // Predicated region
      $region9: #{tpu_custom_call.1} parent=5 // pred_check
        _
      $region10: #{tpu_custom_call.1} parent=5 // pred_check_branch
        %71 = sbr.rel (%p68) target = $region12
      $region11: #{tpu_custom_call.1} parent=5 // pred_region
        %s72 = ssub.s32 %s11, 1
        // Predicated region
        $region13: #{tpu_custom_call.1} parent=11 // pred_check
          %p73 = pneg %p32
        $region14: #{tpu_custom_call.1} parent=11 // pred_check_branch
          %75 = sbr.rel (%p73) target = $region16
        $region15: #{tpu_custom_call.1} parent=11 // pred_region
          %s77 = ssub.s32 128, 128
          %78 = vsyncadd [#allocation3], %s77
          %s80 = sshll.u32 [#allocation2], 4
          %s81 = int_to_ptr.vmem [resolvable:$true] %s80
          %83 = dma.hbm_to_vmem [thread:$0]  %s0, 128, %s81, [#allocation3]
        $region16: #{tpu_custom_call.1} parent=11 // pred_fallthru
          _
      $region12: #{tpu_custom_call.1} parent=5 // pred_fallthru
        _
      %p84 = scmp.lt.s32.totalorder %s11, 2
      // Predicated region
      $region17: #{tpu_custom_call.1} parent=5 // pred_check
        %p85 = pneg %p84
      $region18: #{tpu_custom_call.1} parent=5 // pred_check_branch
        %87 = sbr.rel (%p85) target = $region20
      $region19: #{tpu_custom_call.1} parent=5 // pred_region
        _
      $region20: #{tpu_custom_call.1} parent=5 // pred_fallthru
        _
      %p88 = scmp.le.s32.totalorder 1, %s11
      %p89 = scmp.lt.s32.totalorder %s11, 3
      %p90 = pnand %p88, %p89
      %p91 = pneg %p90
      // Predicated region
      $region21: #{tpu_custom_call.1} parent=5 // pred_check
        _
      $region22: #{tpu_custom_call.1} parent=5 // pred_check_branch
        %93 = sbr.rel (%p90) target = $region24
      $region23: #{tpu_custom_call.1} parent=5 // pred_region
        %s94 = ssub.s32 %s11, 1
        // Predicated region
        $region25: #{tpu_custom_call.1} parent=23 // pred_check
          %p95 = pneg %p32
        $region26: #{tpu_custom_call.1} parent=23 // pred_check_branch
          %97 = sbr.rel (%p95) target = $region28
        $region27: #{tpu_custom_call.1} parent=23 // pred_region
          %98 = dma.done [#allocation3], 128
        $region28: #{tpu_custom_call.1} parent=23 // pred_fallthru
          _
        %p99 = pneg %p32
        %p100 = pneg %p29
        %p101 = pneg %p58
        %p102 = pneg %p55
        %s103 = sand.u32 %s45, 1
        %s104 = scalar_lea.sflag [#allocation4], %s103
        %s105 = sand.u32 %s45, 1
        %s106 = smul.addr %s105, 8
        %s107 = scalar_lea.vmem [#allocation5], %s106
        %v108 = vld [vmem:[#allocation2] sm:$0xff]
        %v109 = vmul.f32 %v108, 2.0
        %110 = vst [vmem:[%s107] sm:$0xff] %v109
        %s111 = sand.u32 %s45, 1
        %s112 = scalar_lea.sflag [#allocation4], %s111
        %s113 = sand.u32 %s45, 1
        %s114 = smul.addr %s113, 8
        %s115 = scalar_lea.vmem [#allocation5], %s114
        // Predicated region
        $region29: #{tpu_custom_call.1} parent=23 // pred_check
          %p116 = pneg %p55
        $region30: #{tpu_custom_call.1} parent=23 // pred_check_branch
          %118 = sbr.rel (%p116) target = $region32
        $region31: #{tpu_custom_call.1} parent=23 // pred_region
          %s120 = ssub.s32 128, 128
          %121 = vsyncadd %s112, %s120
          %s122 = smul.addr %s16, 128
          %s123 = scalar_lea.hbm %s1, %s122
          %s125 = sshll.u32 %s115, 4
          %s126 = int_to_ptr.vmem [resolvable:$true] %s125
          %128 = dma.vmem_to_hbm [thread:$0]  %s126, 128, %s123, %s112
        $region32: #{tpu_custom_call.1} parent=23 // pred_fallthru
          _
      $region24: #{tpu_custom_call.1} parent=5 // pred_fallthru
        _
      %p129 = scmp.le.s32.totalorder 2, %s11
      // Predicated region
      $region33: #{tpu_custom_call.1} parent=5 // pred_check
        %p130 = pneg %p129
      $region34: #{tpu_custom_call.1} parent=5 // pred_check_branch
        %132 = sbr.rel (%p130) target = $region36
      $region35: #{tpu_custom_call.1} parent=5 // pred_region
        %s133 = ssub.s32 %s11, 2
        // Predicated region
        $region37: #{tpu_custom_call.1} parent=35 // pred_check
          %p134 = pneg %p61
        $region38: #{tpu_custom_call.1} parent=35 // pred_check_branch
          %136 = sbr.rel (%p134) target = $region40
        $region39: #{tpu_custom_call.1} parent=35 // pred_region
          %s137 = sand.u32 %s46, 1
          %s138 = scalar_lea.sflag [#allocation4], %s137
          %s139 = sand.u32 %s46, 1
          %s140 = smul.addr %s139, 8
          %s141 = scalar_lea.vmem [#allocation5], %s140
          %142 = dma.done %s138, 128
        $region40: #{tpu_custom_call.1} parent=35 // pred_fallthru
          _
      $region36: #{tpu_custom_call.1} parent=5 // pred_fallthru
        _
    $region6: #{tpu_custom_call.1} parent=1 // loop_footer
      %s15 = sadd.s32 1, %s11
    $region7: #{tpu_custom_call.1} parent=1 // loop_footer_branch
      %10 = sbr.rel target = $region3
    $region8: #{tpu_custom_call.1} parent=1 // loop_exit
      _
    %143 = vsyncpa [#allocation3], 1
    %s144 = scalar_lea.sflag [#allocation3], 1
    %145 = vsyncpa %s144, 1
    %146 = vsyncpa [#allocation4], 1
    %s147 = scalar_lea.sflag [#allocation4], 1
    %148 = vsyncpa %s147, 1

// kernel: _forward_impl.1
$region0: #{_forward_impl.1}
  #allocation0 [shape = 'u32[]', space=smem, size = 0x4, offset = 0x4, fixed_abs, tag = 'smem constant byte address 0x4 - core index']
  #allocation1 [shape = 'u32[144,128]{1,0:T(1,128)}', space=vmem, size = 0x12000, scoped, tag = 'internal scratch']
  %s0 = inlined_call_operand.vmem [shape: bf16[8,128], index: 0, kind: input, shape index: {}]
  %s1 = inlined_call_operand.vmem [shape: f32[8,128], index: 1, kind: input, shape index: {}]
  %s2 = inlined_call_operand.hbm [shape: bf16[128,128], index: 2, kind: input, shape index: {}]
  %s3 = inlined_call_operand.vmem [shape: f32[1,128], index: 3, kind: input, shape index: {}]
  %s4 = inlined_call_operand.hbm [shape: bf16[128,128], index: 4, kind: input, shape index: {}]
  %s5 = inlined_call_operand.vmem [shape: f32[1,128], index: 5, kind: input, shape index: {}]
  %s6 = inlined_call_operand.hbm [shape: bf16[128,128], index: 6, kind: input, shape index: {}]
  %s7 = inlined_call_operand.vmem [shape: f32[1,128], index: 7, kind: input, shape index: {}]
  %s8 = inlined_call_operand.hbm [shape: bf16[128,128], index: 8, kind: input, shape index: {}]
  %s9 = inlined_call_operand.vmem [shape: f32[1,128], index: 9, kind: input, shape index: {}]
  %s10 = inlined_call_operand.hbm [shape: bf16[128,256], index: 10, kind: input, shape index: {}]
  %s11 = inlined_call_operand.vmem [shape: f32[1,256], index: 11, kind: input, shape index: {}]
  %s12 = inlined_call_operand.vmem [shape: f32[8,384], index: 12, kind: output, shape index: {}]
  %s13 = sld [smem:[#allocation0]]
  $region78: #{_forward_impl.1} parent=0
    _
  %s15 = ssub.s32 1, %s13
  %s16 = scalar_select 0, %s15, %s13
  $region1: #{_forward_impl.1} parent=0
    #allocation2 [shape = 'u8[32768]{0}', space=vmem, size = 0x8000, scoped, tag = 'input window, operand 2, single buffered']
    #allocation3 [shape = 's32[1]{0}', space=sflag, size = 0x4, scoped, tag = 'scoped memory for _forward_impl.1']
    #allocation4 [shape = 'u8[32768]{0}', space=vmem, size = 0x8000, scoped, tag = 'input window, operand 4, single buffered']
    #allocation5 [shape = 's32[1]{0}', space=sflag, size = 0x4, scoped, tag = 'scoped memory for _forward_impl.1']
    #allocation6 [shape = 'u8[32768]{0}', space=vmem, size = 0x8000, scoped, tag = 'input window, operand 6, single buffered']
    #allocation7 [shape = 'u8[32768]{0}', space=vmem, size = 0x8000, scoped, tag = 'input window, operand 8, single buffered']
    #allocation8 [shape = 's32[1]{0}', space=sflag, size = 0x4, scoped, tag = 'scoped memory for _forward_impl.1']
    #allocation9 [shape = 'u8[65536]{0}', space=vmem, size = 0x10000, scoped, tag = 'input window, operand 10, single buffered']
    %17 = vsyncpa [#allocation3], 0
    %18 = vsyncpa [#allocation5], 0
    %19 = vsyncpa [#allocation8], 0
    // Predicated region
    $region2: #{_forward_impl.1} parent=1 // pred_check
      _
    $region3: #{_forward_impl.1} parent=1 // pred_check_branch
      %21 = sbr.rel (0) target = $region5
    $region4: #{_forward_impl.1} parent=1 // pred_region
      _
    $region5: #{_forward_impl.1} parent=1 // pred_fallthru
      _
    // Predicated region
    $region6: #{_forward_impl.1} parent=1 // pred_check
      _
    $region7: #{_forward_impl.1} parent=1 // pred_check_branch
      %23 = sbr.rel (0) target = $region9
    $region8: #{_forward_impl.1} parent=1 // pred_region
      _
    $region9: #{_forward_impl.1} parent=1 // pred_fallthru
      _
    // Predicated region
    $region10: #{_forward_impl.1} parent=1 // pred_check
      _
    $region11: #{_forward_impl.1} parent=1 // pred_check_branch
      %25 = sbr.rel (0) target = $region13
    $region12: #{_forward_impl.1} parent=1 // pred_region
      %s27 = ssub.s32 1024, 1024
      %28 = vsyncadd [#allocation3], %s27
      %s29 = sshll.u32 [#allocation2], 4
      %s30 = int_to_ptr.vmem [resolvable:$true] %s29
      %35 = dma.hbm_to_vmem [thread:$0]  %s2, 1024, %s30, [#allocation3], 64, 64, 4
    $region13: #{_forward_impl.1} parent=1 // pred_fallthru
      _
    // Predicated region
    $region14: #{_forward_impl.1} parent=1 // pred_check
      _
    $region15: #{_forward_impl.1} parent=1 // pred_check_branch
      %37 = sbr.rel (0) target = $region17
    $region16: #{_forward_impl.1} parent=1 // pred_region
      _
    $region17: #{_forward_impl.1} parent=1 // pred_fallthru
      _
    // Predicated region
    $region18: #{_forward_impl.1} parent=1 // pred_check
      _
    $region19: #{_forward_impl.1} parent=1 // pred_check_branch
      %39 = sbr.rel (0) target = $region21
    $region20: #{_forward_impl.1} parent=1 // pred_region
      %s41 = ssub.s32 1024, 1024
      %42 = vsyncadd [#allocation5], %s41
      %s43 = sshll.u32 [#allocation4], 4
      %s44 = int_to_ptr.vmem [resolvable:$true] %s43
      %49 = dma.hbm_to_vmem [thread:$0]  %s4, 1024, %s44, [#allocation5], 64, 64, 4
    $region21: #{_forward_impl.1} parent=1 // pred_fallthru
      _
    // Predicated region
    $region22: #{_forward_impl.1} parent=1 // pred_check
      _
    $region23: #{_forward_impl.1} parent=1 // pred_check_branch
      %51 = sbr.rel (0) target = $region25
    $region24: #{_forward_impl.1} parent=1 // pred_region
      _
    $region25: #{_forward_impl.1} parent=1 // pred_fallthru
      _
    // Predicated region
    $region26: #{_forward_impl.1} parent=1 // pred_check
      _
    $region27: #{_forward_impl.1} parent=1 // pred_check_branch
      %53 = sbr.rel (0) target = $region29
    $region28: #{_forward_impl.1} parent=1 // pred_region
      %s55 = ssub.s32 1024, 1024
      %56 = vsyncadd [#allocation5], %s55
      %s57 = sshll.u32 [#allocation6], 4
      %s58 = int_to_ptr.vmem [resolvable:$true] %s57
      %63 = dma.hbm_to_vmem [thread:$0]  %s6, 1024, %s58, [#allocation5], 64, 64, 4
    $region29: #{_forward_impl.1} parent=1 // pred_fallthru
      _
    // Predicated region
    $region30: #{_forward_impl.1} parent=1 // pred_check
      _
    $region31: #{_forward_impl.1} parent=1 // pred_check_branch
      %65 = sbr.rel (0) target = $region33
    $region32: #{_forward_impl.1} parent=1 // pred_region
      _
    $region33: #{_forward_impl.1} parent=1 // pred_fallthru
      _
    // Predicated region
    $region34: #{_forward_impl.1} parent=1 // pred_check
      _
    $region35: #{_forward_impl.1} parent=1 // pred_check_branch
      %67 = sbr.rel (0) target = $region37
    $region36: #{_forward_impl.1} parent=1 // pred_region
      %s69 = ssub.s32 1024, 1024
      %70 = vsyncadd [#allocation8], %s69
      %s71 = sshll.u32 [#allocation7], 4
      %s72 = int_to_ptr.vmem [resolvable:$true] %s71
      %77 = dma.hbm_to_vmem [thread:$0]  %s8, 1024, %s72, [#allocation8], 64, 64, 4
    $region37: #{_forward_impl.1} parent=1 // pred_fallthru
      _
    // Predicated region
    $region38: #{_forward_impl.1} parent=1 // pred_check
      _
    $region39: #{_forward_impl.1} parent=1 // pred_check_branch
      %79 = sbr.rel (0) target = $region41
    $region40: #{_forward_impl.1} parent=1 // pred_region
      _
    $region41: #{_forward_impl.1} parent=1 // pred_fallthru
      _
    // Predicated region
    $region42: #{_forward_impl.1} parent=1 // pred_check
      _
    $region43: #{_forward_impl.1} parent=1 // pred_check_branch
      %81 = sbr.rel (0) target = $region45
    $region44: #{_forward_impl.1} parent=1 // pred_region
      %s83 = ssub.s32 2048, 2048
      %84 = vsyncadd [#allocation8], %s83
      %s85 = sshll.u32 [#allocation9], 4
      %s86 = int_to_ptr.vmem [resolvable:$true] %s85
      %91 = dma.hbm_to_vmem [thread:$0]  %s10, 2048, %s86, [#allocation8], 128, 128, 8
    $region45: #{_forward_impl.1} parent=1 // pred_fallthru
      _
    // Predicated region
    $region46: #{_forward_impl.1} parent=1 // pred_check
      _
    $region47: #{_forward_impl.1} parent=1 // pred_check_branch
      %93 = sbr.rel (0) target = $region49
    $region48: #{_forward_impl.1} parent=1 // pred_region
      _
    $region49: #{_forward_impl.1} parent=1 // pred_fallthru
      _
    // Predicated region
    $region50: #{_forward_impl.1} parent=1 // pred_check
      _
    $region51: #{_forward_impl.1} parent=1 // pred_check_branch
      %95 = sbr.rel (0) target = $region53
    $region52: #{_forward_impl.1} parent=1 // pred_region
      %96 = dma.done [#allocation3], 1024
    $region53: #{_forward_impl.1} parent=1 // pred_fallthru
      _
    // Predicated region
    $region54: #{_forward_impl.1} parent=1 // pred_check
      _
    $region55: #{_forward_impl.1} parent=1 // pred_check_branch
      %98 = sbr.rel (0) target = $region57
    $region56: #{_forward_impl.1} parent=1 // pred_region
      %99 = dma.done [#allocation5], 1024
    $region57: #{_forward_impl.1} parent=1 // pred_fallthru
      _
    // Predicated region
    $region58: #{_forward_impl.1} parent=1 // pred_check
      _
    $region59: #{_forward_impl.1} parent=1 // pred_check_branch
      %101 = sbr.rel (0) target = $region61
    $region60: #{_forward_impl.1} parent=1 // pred_region
      %102 = dma.done [#allocation5], 1024
    $region61: #{_forward_impl.1} parent=1 // pred_fallthru
      _
    // Predicated region
    $region62: #{_forward_impl.1} parent=1 // pred_check
      _
    $region63: #{_forward_impl.1} parent=1 // pred_check_branch
      %104 = sbr.rel (0) target = $region65
    $region64: #{_forward_impl.1} parent=1 // pred_region
      %105 = dma.done [#allocation8], 1024
    $region65: #{_forward_impl.1} parent=1 // pred_fallthru
      _
    // Predicated region
    $region66: #{_forward_impl.1} parent=1 // pred_check
      _
    $region67: #{_forward_impl.1} parent=1 // pred_check_branch
      %107 = sbr.rel (0) target = $region69
    $region68: #{_forward_impl.1} parent=1 // pred_region
      %108 = dma.done [#allocation8], 2048
    $region69: #{_forward_impl.1} parent=1 // pred_fallthru
      _
    %v110 = vld [vmem:[%s0] sm:$0xf]
    %v111 = vld [vmem:[#allocation2] sm:$0xf]
    %v112 = vld [vmem:[#allocation2 + $0x4] sm:$0xf]
    %v113 = vld [vmem:[#allocation2 + $0x8] sm:$0xf]
    %v114 = vld [vmem:[#allocation2 + $0xc] sm:$0xf]
    %v115 = vld [vmem:[#allocation2 + $0x10] sm:$0xf]
    %v116 = vld [vmem:[#allocation2 + $0x14] sm:$0xf]
    %v117 = vld [vmem:[#allocation2 + $0x18] sm:$0xf]
    %v118 = vld [vmem:[#allocation2 + $0x1c] sm:$0xf]
    %v119 = vld [vmem:[#allocation2 + $0x20] sm:$0xf]
    %v120 = vld [vmem:[#allocation2 + $0x24] sm:$0xf]
    %v121 = vld [vmem:[#allocation2 + $0x28] sm:$0xf]
    %v122 = vld [vmem:[#allocation2 + $0x2c] sm:$0xf]
    %v123 = vld [vmem:[#allocation2 + $0x30] sm:$0xf]
    %v124 = vld [vmem:[#allocation2 + $0x34] sm:$0xf]
    %v125 = vld [vmem:[#allocation2 + $0x38] sm:$0xf]
    %v126 = vld [vmem:[#allocation2 + $0x3c] sm:$0xf]
    %v127 = vld [vmem:[%s3] sm:$0x1]
    %v129 = vlaneseq
    %v130 = vshrl.u32 %v129, 7
    %v131 = vsub.s32 0, %v130
    %v132 = vrot.slane %v127, %v131
    %v150 = vunpack.c.l.b16 %v111
    %v151 = vunpack.c.l.b16 %v112
    %v152 = vunpack.c.l.b16 %v113
    %v153 = vunpack.c.l.b16 %v114
    %v154 = vunpack.c.l.b16 %v115
    %v155 = vunpack.c.l.b16 %v116
    %v156 = vunpack.c.l.b16 %v117
    %v157 = vunpack.c.l.b16 %v118
    %v158 = vunpack.c.l.b16 %v119
    %v159 = vunpack.c.l.b16 %v120
    %v160 = vunpack.c.l.b16 %v121
    %v161 = vunpack.c.l.b16 %v122
    %v162 = vunpack.c.l.b16 %v123
    %v163 = vunpack.c.l.b16 %v124
    %v164 = vunpack.c.l.b16 %v125
    %v165 = vunpack.c.l.b16 %v126
    %v166 = vpack.c.b16 %v151, %v150
    %v167 = vpack.c.b16 %v153, %v152
    %v168 = vpack.c.b16 %v155, %v154
    %v169 = vpack.c.b16 %v157, %v156
    %v170 = vpack.c.b16 %v159, %v158
    %v171 = vpack.c.b16 %v161, %v160
    %v172 = vpack.c.b16 %v163, %v162
    %v173 = vpack.c.b16 %v165, %v164
    %182 = vmatprep.subr.bf16.mxu0 0
    %183 = vmatpush1.bf16.msra.mxu0 %v173
    %184 = vmatprep.subr.bf16.mxu0 0
    %185 = vmatpush1.bf16.msra.mxu0 %v172
    %186 = vmatprep.subr.bf16.mxu0 0
    %187 = vmatpush1.bf16.msra.mxu0 %v171
    %188 = vmatprep.subr.bf16.mxu0 0
    %189 = vmatpush1.bf16.msra.mxu0 %v170
    %190 = vmatprep.subr.bf16.mxu0 0
    %191 = vmatpush1.bf16.msra.mxu0 %v169
    %192 = vmatprep.subr.bf16.mxu0 0
    %193 = vmatpush1.bf16.msra.mxu0 %v168
    %194 = vmatprep.subr.bf16.mxu0 0
    %195 = vmatpush1.bf16.msra.mxu0 %v167
    %196 = vmatprep.subr.bf16.mxu0 0
    %197 = vmatpush1.bf16.msra.mxu0 %v166
    %198 = vmatprep.subr.bf16.mxu0 0
    %199 = vmatpush2.bf16.msra.mxu0 0
    %200 = vmatprep.subr.bf16.mxu0 0
    %201 = vmatpush2.bf16.msra.mxu0 0
    %202 = vmatprep.subr.bf16.mxu0 0
    %203 = vmatpush2.bf16.msra.mxu0 0
    %204 = vmatprep.subr.bf16.mxu0 0
    %205 = vmatpush2.bf16.msra.mxu0 0
    %206 = vmatprep.subr.bf16.mxu0 0
    %207 = vmatpush2.bf16.msra.mxu0 0
    %208 = vmatprep.subr.bf16.mxu0 0
    %209 = vmatpush2.bf16.msra.mxu0 0
    %210 = vmatprep.subr.bf16.mxu0 0
    %211 = vmatpush2.bf16.msra.mxu0 0
    %212 = vmatprep.subr.bf16.mxu0 0
    %213 = vmatpush2.bf16.msra.mxu0 0
    %214 = vmatprep.mubr.bf16.mxu0 0
    %215 = vmatmul.mubr.bf16.gmra.mxu0 %v110
    %v216 = vpop.f32.mrf.mxu0
    %v217 = vadd.f32 %v132, %v216
    %v218 = vpop.f32.mrf.mxu0
    %v219 = vpop.f32.mrf.mxu0
    %v220 = vpop.f32.mrf.mxu0
    %221 = vdwg.mxu0
    %v222 = vld [vmem:[%s1] sm:$0xff]
    %v223 = vmax.f32 %v217, 0.0
    %v224 = vpack.c.bf16 %v223, %v223
    %v225 = vld [vmem:[#allocation4] sm:$0xf]
    %v226 = vld [vmem:[#allocation4 + $0x4] sm:$0xf]
    %v227 = vld [vmem:[#allocation4 + $0x8] sm:$0xf]
    %v228 = vld [vmem:[#allocation4 + $0xc] sm:$0xf]
    %v229 = vld [vmem:[#allocation4 + $0x10] sm:$0xf]
    %v230 = vld [vmem:[#allocation4 + $0x14] sm:$0xf]
    %v231 = vld [vmem:[#allocation4 + $0x18] sm:$0xf]
    %v232 = vld [vmem:[#allocation4 + $0x1c] sm:$0xf]
    %v233 = vld [vmem:[#allocation4 + $0x20] sm:$0xf]
    %v234 = vld [vmem:[#allocation4 + $0x24] sm:$0xf]
    %v235 = vld [vmem:[#allocation4 + $0x28] sm:$0xf]
    %v236 = vld [vmem:[#allocation4 + $0x2c] sm:$0xf]
    %v237 = vld [vmem:[#allocation4 + $0x30] sm:$0xf]
    %v238 = vld [vmem:[#allocation4 + $0x34] sm:$0xf]
    %v239 = vld [vmem:[#allocation4 + $0x38] sm:$0xf]
    %v240 = vld [vmem:[#allocation4 + $0x3c] sm:$0xf]
    %v241 = vld [vmem:[%s5] sm:$0x1]
    %v243 = vlaneseq
    %v244 = vshrl.u32 %v243, 7
    %v245 = vsub.s32 0, %v244
    %v246 = vrot.slane %v241, %v245
    %v264 = vunpack.c.l.b16 %v225
    %v265 = vunpack.c.l.b16 %v226
    %v266 = vunpack.c.l.b16 %v227
    %v267 = vunpack.c.l.b16 %v228
    %v268 = vunpack.c.l.b16 %v229
    %v269 = vunpack.c.l.b16 %v230
    %v270 = vunpack.c.l.b16 %v231
    %v271 = vunpack.c.l.b16 %v232
    %v272 = vunpack.c.l.b16 %v233
    %v273 = vunpack.c.l.b16 %v234
    %v274 = vunpack.c.l.b16 %v235
    %v275 = vunpack.c.l.b16 %v236
    %v276 = vunpack.c.l.b16 %v237
    %v277 = vunpack.c.l.b16 %v238
    %v278 = vunpack.c.l.b16 %v239
    %v279 = vunpack.c.l.b16 %v240
    %v280 = vpack.c.b16 %v265, %v264
    %v281 = vpack.c.b16 %v267, %v266
    %v282 = vpack.c.b16 %v269, %v268
    %v283 = vpack.c.b16 %v271, %v270
    %v284 = vpack.c.b16 %v273, %v272
    %v285 = vpack.c.b16 %v275, %v274
    %v286 = vpack.c.b16 %v277, %v276
    %v287 = vpack.c.b16 %v279, %v278
    %296 = vmatprep.subr.bf16.mxu0 0
    %297 = vmatpush1.bf16.msra.mxu0 %v287
    %298 = vmatprep.subr.bf16.mxu0 0
    %299 = vmatpush1.bf16.msra.mxu0 %v286
    %300 = vmatprep.subr.bf16.mxu0 0
    %301 = vmatpush1.bf16.msra.mxu0 %v285
    %302 = vmatprep.subr.bf16.mxu0 0
    %303 = vmatpush1.bf16.msra.mxu0 %v284
    %304 = vmatprep.subr.bf16.mxu0 0
    %305 = vmatpush1.bf16.msra.mxu0 %v283
    %306 = vmatprep.subr.bf16.mxu0 0
    %307 = vmatpush1.bf16.msra.mxu0 %v282
    %308 = vmatprep.subr.bf16.mxu0 0
    %309 = vmatpush1.bf16.msra.mxu0 %v281
    %310 = vmatprep.subr.bf16.mxu0 0
    %311 = vmatpush1.bf16.msra.mxu0 %v280
    %312 = vmatprep.subr.bf16.mxu0 0
    %313 = vmatpush2.bf16.msra.mxu0 0
    %314 = vmatprep.subr.bf16.mxu0 0
    %315 = vmatpush2.bf16.msra.mxu0 0
    %316 = vmatprep.subr.bf16.mxu0 0
    %317 = vmatpush2.bf16.msra.mxu0 0
    %318 = vmatprep.subr.bf16.mxu0 0
    %319 = vmatpush2.bf16.msra.mxu0 0
    %320 = vmatprep.subr.bf16.mxu0 0
    %321 = vmatpush2.bf16.msra.mxu0 0
    %322 = vmatprep.subr.bf16.mxu0 0
    %323 = vmatpush2.bf16.msra.mxu0 0
    %324 = vmatprep.subr.bf16.mxu0 0
    %325 = vmatpush2.bf16.msra.mxu0 0
    %326 = vmatprep.subr.bf16.mxu0 0
    %327 = vmatpush2.bf16.msra.mxu0 0
    %328 = vmatprep.mubr.bf16.mxu0 0
    %329 = vmatmul.mubr.bf16.gmra.mxu0 %v224
    %v330 = vpop.f32.mrf.mxu0
    %v331 = vadd.f32 %v246, %v330
    %v332 = vpop.f32.mrf.mxu0
    %v333 = vpop.f32.mrf.mxu0
    %v334 = vpop.f32.mrf.mxu0
    %335 = vdwg.mxu0
    %v336 = vmax.f32 %v331, 0.0
    %v337 = vpack.c.bf16 %v336, %v336
    %v338 = vld [vmem:[#allocation6] sm:$0xf]
    %v339 = vld [vmem:[#allocation6 + $0x4] sm:$0xf]
    %v340 = vld [vmem:[#allocation6 + $0x8] sm:$0xf]
    %v341 = vld [vmem:[#allocation6 + $0xc] sm:$0xf]
    %v342 = vld [vmem:[#allocation6 + $0x10] sm:$0xf]
    %v343 = vld [vmem:[#allocation6 + $0x14] sm:$0xf]
    %v344 = vld [vmem:[#allocation6 + $0x18] sm:$0xf]
    %v345 = vld [vmem:[#allocation6 + $0x1c] sm:$0xf]
    %v346 = vld [vmem:[#allocation6 + $0x20] sm:$0xf]
    %v347 = vld [vmem:[#allocation6 + $0x24] sm:$0xf]
    %v348 = vld [vmem:[#allocation6 + $0x28] sm:$0xf]
    %v349 = vld [vmem:[#allocation6 + $0x2c] sm:$0xf]
    %v350 = vld [vmem:[#allocation6 + $0x30] sm:$0xf]
    %v351 = vld [vmem:[#allocation6 + $0x34] sm:$0xf]
    %v352 = vld [vmem:[#allocation6 + $0x38] sm:$0xf]
    %v353 = vld [vmem:[#allocation6 + $0x3c] sm:$0xf]
    %v354 = vld [vmem:[%s7] sm:$0x1]
    %v356 = vlaneseq
    %v357 = vshrl.u32 %v356, 7
    %v358 = vsub.s32 0, %v357
    %v359 = vrot.slane %v354, %v358
    %v377 = vunpack.c.l.b16 %v338
    %v378 = vunpack.c.l.b16 %v339
    %v379 = vunpack.c.l.b16 %v340
    %v380 = vunpack.c.l.b16 %v341
    %v381 = vunpack.c.l.b16 %v342
    %v382 = vunpack.c.l.b16 %v343
    %v383 = vunpack.c.l.b16 %v344
    %v384 = vunpack.c.l.b16 %v345
    %v385 = vunpack.c.l.b16 %v346
    %v386 = vunpack.c.l.b16 %v347
    %v387 = vunpack.c.l.b16 %v348
    %v388 = vunpack.c.l.b16 %v349
    %v389 = vunpack.c.l.b16 %v350
    %v390 = vunpack.c.l.b16 %v351
    %v391 = vunpack.c.l.b16 %v352
    %v392 = vunpack.c.l.b16 %v353
    %v393 = vpack.c.b16 %v378, %v377
    %v394 = vpack.c.b16 %v380, %v379
    %v395 = vpack.c.b16 %v382, %v381
    %v396 = vpack.c.b16 %v384, %v383
    %v397 = vpack.c.b16 %v386, %v385
    %v398 = vpack.c.b16 %v388, %v387
    %v399 = vpack.c.b16 %v390, %v389
    %v400 = vpack.c.b16 %v392, %v391
    %409 = vmatprep.subr.bf16.mxu0 0
    %410 = vmatpush1.bf16.msra.mxu0 %v400
    %411 = vmatprep.subr.bf16.mxu0 0
    %412 = vmatpush1.bf16.msra.mxu0 %v399
    %413 = vmatprep.subr.bf16.mxu0 0
    %414 = vmatpush1.bf16.msra.mxu0 %v398
    %415 = vmatprep.subr.bf16.mxu0 0
    %416 = vmatpush1.bf16.msra.mxu0 %v397
    %417 = vmatprep.subr.bf16.mxu0 0
    %418 = vmatpush1.bf16.msra.mxu0 %v396
    %419 = vmatprep.subr.bf16.mxu0 0
    %420 = vmatpush1.bf16.msra.mxu0 %v395
    %421 = vmatprep.subr.bf16.mxu0 0
    %422 = vmatpush1.bf16.msra.mxu0 %v394
    %423 = vmatprep.subr.bf16.mxu0 0
    %424 = vmatpush1.bf16.msra.mxu0 %v393
    %425 = vmatprep.subr.bf16.mxu0 0
    %426 = vmatpush2.bf16.msra.mxu0 0
    %427 = vmatprep.subr.bf16.mxu0 0
    %428 = vmatpush2.bf16.msra.mxu0 0
    %429 = vmatprep.subr.bf16.mxu0 0
    %430 = vmatpush2.bf16.msra.mxu0 0
    %431 = vmatprep.subr.bf16.mxu0 0
    %432 = vmatpush2.bf16.msra.mxu0 0
    %433 = vmatprep.subr.bf16.mxu0 0
    %434 = vmatpush2.bf16.msra.mxu0 0
    %435 = vmatprep.subr.bf16.mxu0 0
    %436 = vmatpush2.bf16.msra.mxu0 0
    %437 = vmatprep.subr.bf16.mxu0 0
    %438 = vmatpush2.bf16.msra.mxu0 0
    %439 = vmatprep.subr.bf16.mxu0 0
    %440 = vmatpush2.bf16.msra.mxu0 0
    %441 = vmatprep.mubr.bf16.mxu0 0
    %442 = vmatmul.mubr.bf16.gmra.mxu0 %v337
    %v443 = vpop.f32.mrf.mxu0
    %v444 = vadd.f32 %v359, %v443
    %v445 = vpop.f32.mrf.mxu0
    %v446 = vpop.f32.mrf.mxu0
    %v447 = vpop.f32.mrf.mxu0
    %448 = vdwg.mxu0
    %v449 = vmax.f32 %v444, 0.0
    %v450 = vpack.c.bf16 %v449, %v449
    %v451 = vld [vmem:[#allocation7] sm:$0xf]
    %v452 = vld [vmem:[#allocation7 + $0x4] sm:$0xf]
    %v453 = vld [vmem:[#allocation7 + $0x8] sm:$0xf]
    %v454 = vld [vmem:[#allocation7 + $0xc] sm:$0xf]
    %v455 = vld [vmem:[#allocation7 + $0x10] sm:$0xf]
    %v456 = vld [vmem:[#allocation7 + $0x14] sm:$0xf]
    %v457 = vld [vmem:[#allocation7 + $0x18] sm:$0xf]
    %v458 = vld [vmem:[#allocation7 + $0x1c] sm:$0xf]
    %v459 = vld [vmem:[#allocation7 + $0x20] sm:$0xf]
    %v460 = vld [vmem:[#allocation7 + $0x24] sm:$0xf]
    %v461 = vld [vmem:[#allocation7 + $0x28] sm:$0xf]
    %v462 = vld [vmem:[#allocation7 + $0x2c] sm:$0xf]
    %v463 = vld [vmem:[#allocation7 + $0x30] sm:$0xf]
    %v464 = vld [vmem:[#allocation7 + $0x34] sm:$0xf]
    %v465 = vld [vmem:[#allocation7 + $0x38] sm:$0xf]
    %v466 = vld [vmem:[#allocation7 + $0x3c] sm:$0xf]
    %v467 = vld [vmem:[%s9] sm:$0x1]
    %v469 = vlaneseq
    %v470 = vshrl.u32 %v469, 7
    %v471 = vsub.s32 0, %v470
    %v472 = vrot.slane %v467, %v471
    %v490 = vunpack.c.l.b16 %v451
    %v491 = vunpack.c.l.b16 %v452
    %v492 = vunpack.c.l.b16 %v453
    %v493 = vunpack.c.l.b16 %v454
    %v494 = vunpack.c.l.b16 %v455
    %v495 = vunpack.c.l.b16 %v456
    %v496 = vunpack.c.l.b16 %v457
    %v497 = vunpack.c.l.b16 %v458
    %v498 = vunpack.c.l.b16 %v459
    %v499 = vunpack.c.l.b16 %v460
    %v500 = vunpack.c.l.b16 %v461
    %v501 = vunpack.c.l.b16 %v462
    %v502 = vunpack.c.l.b16 %v463
    %v503 = vunpack.c.l.b16 %v464
    %v504 = vunpack.c.l.b16 %v465
    %v505 = vunpack.c.l.b16 %v466
    %v506 = vpack.c.b16 %v491, %v490
    %v507 = vpack.c.b16 %v493, %v492
    %v508 = vpack.c.b16 %v495, %v494
    %v509 = vpack.c.b16 %v497, %v496
    %v510 = vpack.c.b16 %v499, %v498
    %v511 = vpack.c.b16 %v501, %v500
    %v512 = vpack.c.b16 %v503, %v502
    %v513 = vpack.c.b16 %v505, %v504
    %522 = vmatprep.subr.bf16.mxu0 0
    %523 = vmatpush1.bf16.msra.mxu0 %v513
    %524 = vmatprep.subr.bf16.mxu0 0
    %525 = vmatpush1.bf16.msra.mxu0 %v512
    %526 = vmatprep.subr.bf16.mxu0 0
    %527 = vmatpush1.bf16.msra.mxu0 %v511
    %528 = vmatprep.subr.bf16.mxu0 0
    %529 = vmatpush1.bf16.msra.mxu0 %v510
    %530 = vmatprep.subr.bf16.mxu0 0
    %531 = vmatpush1.bf16.msra.mxu0 %v509
    %532 = vmatprep.subr.bf16.mxu0 0
    %533 = vmatpush1.bf16.msra.mxu0 %v508
    %534 = vmatprep.subr.bf16.mxu0 0
    %535 = vmatpush1.bf16.msra.mxu0 %v507
    %536 = vmatprep.subr.bf16.mxu0 0
    %537 = vmatpush1.bf16.msra.mxu0 %v506
    %538 = vmatprep.subr.bf16.mxu0 0
    %539 = vmatpush2.bf16.msra.mxu0 0
    %540 = vmatprep.subr.bf16.mxu0 0
    %541 = vmatpush2.bf16.msra.mxu0 0
    %542 = vmatprep.subr.bf16.mxu0 0
    %543 = vmatpush2.bf16.msra.mxu0 0
    %544 = vmatprep.subr.bf16.mxu0 0
    %545 = vmatpush2.bf16.msra.mxu0 0
    %546 = vmatprep.subr.bf16.mxu0 0
    %547 = vmatpush2.bf16.msra.mxu0 0
    %548 = vmatprep.subr.bf16.mxu0 0
    %549 = vmatpush2.bf16.msra.mxu0 0
    %550 = vmatprep.subr.bf16.mxu0 0
    %551 = vmatpush2.bf16.msra.mxu0 0
    %552 = vmatprep.subr.bf16.mxu0 0
    %553 = vmatpush2.bf16.msra.mxu0 0
    %554 = vmatprep.mubr.bf16.mxu0 0
    %555 = vmatmul.mubr.bf16.gmra.mxu0 %v450
    %v556 = vpop.f32.mrf.mxu0
    %v557 = vadd.f32 %v472, %v556
    %v558 = vpop.f32.mrf.mxu0
    %v559 = vpop.f32.mrf.mxu0
    %v560 = vpop.f32.mrf.mxu0
    %561 = vdwg.mxu0
    %v562 = vmax.f32 %v557, 0.0
    %v563 = vpack.c.bf16 %v562, %v562
    %v564 = vld [vmem:[#allocation9] sm:$0xff]
    %v565 = vld [vmem:[#allocation9 + $0x8] sm:$0xff]
    %v566 = vld [vmem:[#allocation9 + $0x10] sm:$0xff]
    %v567 = vld [vmem:[#allocation9 + $0x18] sm:$0xff]
    %v568 = vld [vmem:[#allocation9 + $0x20] sm:$0xff]
    %v569 = vld [vmem:[#allocation9 + $0x28] sm:$0xff]
    %v570 = vld [vmem:[#allocation9 + $0x30] sm:$0xff]
    %v571 = vld [vmem:[#allocation9 + $0x38] sm:$0xff]
    %v572 = vld [vmem:[#allocation9 + $0x40] sm:$0xff]
    %v573 = vld [vmem:[#allocation9 + $0x48] sm:$0xff]
    %v574 = vld [vmem:[#allocation9 + $0x50] sm:$0xff]
    %v575 = vld [vmem:[#allocation9 + $0x58] sm:$0xff]
    %v576 = vld [vmem:[#allocation9 + $0x60] sm:$0xff]
    %v577 = vld [vmem:[#allocation9 + $0x68] sm:$0xff]
    %v578 = vld [vmem:[#allocation9 + $0x70] sm:$0xff]
    %v579 = vld [vmem:[#allocation9 + $0x78] sm:$0xff]
    %v580 = vld [vmem:[%s11] sm:$0x3]
    %v582 = vlaneseq
    %v583 = vshrl.u32 %v582, 7
    %v584 = vsub.s32 0, %v583
    %v585 = vrot.slane %v580, %v584
    %v586 = vlaneseq
    %v587 = vshrl.u32 %v586, 7
    %v588 = vsub.s32 1, %v587
    %v589 = vrot.slane %v580, %v588
    %v608 = vunpack.c.l.b16 %v564
    %v609 = vunpack.c.h.b16 %v564
    %v610 = vunpack.c.l.b16 %v565
    %v611 = vunpack.c.h.b16 %v565
    %v612 = vunpack.c.l.b16 %v566
    %v613 = vunpack.c.h.b16 %v566
    %v614 = vunpack.c.l.b16 %v567
    %v615 = vunpack.c.h.b16 %v567
    %v616 = vunpack.c.l.b16 %v568
    %v617 = vunpack.c.h.b16 %v568
    %v618 = vunpack.c.l.b16 %v569
    %v619 = vunpack.c.h.b16 %v569
    %v620 = vunpack.c.l.b16 %v570
    %v621 = vunpack.c.h.b16 %v570
    %v622 = vunpack.c.l.b16 %v571
    %v623 = vunpack.c.h.b16 %v571
    %v624 = vunpack.c.l.b16 %v572
    %v625 = vunpack.c.h.b16 %v572
    %v626 = vunpack.c.l.b16 %v573
    %v627 = vunpack.c.h.b16 %v573
    %v628 = vunpack.c.l.b16 %v574
    %v629 = vunpack.c.h.b16 %v574
    %v630 = vunpack.c.l.b16 %v575
    %v631 = vunpack.c.h.b16 %v575
    %v632 = vunpack.c.l.b16 %v576
    %v633 = vunpack.c.h.b16 %v576
    %v634 = vunpack.c.l.b16 %v577
    %v635 = vunpack.c.h.b16 %v577
    %v636 = vunpack.c.l.b16 %v578
    %v637 = vunpack.c.h.b16 %v578
    %v638 = vunpack.c.l.b16 %v579
    %v639 = vunpack.c.h.b16 %v579
    %v640 = vpack.c.b16 %v610, %v608
    %v641 = vpack.c.b16 %v611, %v609
    %v642 = vpack.c.b16 %v614, %v612
    %v643 = vpack.c.b16 %v615, %v613
    %v644 = vpack.c.b16 %v618, %v616
    %v645 = vpack.c.b16 %v619, %v617
    %v646 = vpack.c.b16 %v622, %v620
    %v647 = vpack.c.b16 %v623, %v621
    %v648 = vpack.c.b16 %v626, %v624
    %v649 = vpack.c.b16 %v627, %v625
    %v650 = vpack.c.b16 %v630, %v628
    %v651 = vpack.c.b16 %v631, %v629
    %v652 = vpack.c.b16 %v634, %v632
    %v653 = vpack.c.b16 %v635, %v633
    %v654 = vpack.c.b16 %v638, %v636
    %v655 = vpack.c.b16 %v639, %v637
    %672 = vmatprep.subr.bf16.mxu0 %v655
    %673 = vmatpush1.bf16.msra.mxu0 %v654
    %674 = vmatprep.subr.bf16.mxu0 %v653
    %675 = vmatpush1.bf16.msra.mxu0 %v652
    %676 = vmatprep.subr.bf16.mxu0 %v651
    %677 = vmatpush1.bf16.msra.mxu0 %v650
    %678 = vmatprep.subr.bf16.mxu0 %v649
    %679 = vmatpush1.bf16.msra.mxu0 %v648
    %680 = vmatprep.subr.bf16.mxu0 %v647
    %681 = vmatpush1.bf16.msra.mxu0 %v646
    %682 = vmatprep.subr.bf16.mxu0 %v645
    %683 = vmatpush1.bf16.msra.mxu0 %v644
    %684 = vmatprep.subr.bf16.mxu0 %v643
    %685 = vmatpush1.bf16.msra.mxu0 %v642
    %686 = vmatprep.subr.bf16.mxu0 %v641
    %687 = vmatpush1.bf16.msra.mxu0 %v640
    %688 = vmatprep.subr.bf16.mxu0 0
    %689 = vmatpush2.bf16.msra.mxu0 0
    %690 = vmatprep.subr.bf16.mxu0 0
    %691 = vmatpush2.bf16.msra.mxu0 0
    %692 = vmatprep.subr.bf16.mxu0 0
    %693 = vmatpush2.bf16.msra.mxu0 0
    %694 = vmatprep.subr.bf16.mxu0 0
    %695 = vmatpush2.bf16.msra.mxu0 0
    %696 = vmatprep.subr.bf16.mxu0 0
    %697 = vmatpush2.bf16.msra.mxu0 0
    %698 = vmatprep.subr.bf16.mxu0 0
    %699 = vmatpush2.bf16.msra.mxu0 0
    %700 = vmatprep.subr.bf16.mxu0 0
    %701 = vmatpush2.bf16.msra.mxu0 0
    %702 = vmatprep.subr.bf16.mxu0 0
    %703 = vmatpush2.bf16.msra.mxu0 0
    %704 = vmatprep.mubr.bf16.mxu0 0
    %705 = vmatmul.mubr.bf16.gmra.mxu0 %v563
    %v706 = vpop.f32.mrf.mxu0
    %v707 = vadd.f32 %v585, %v706
    %v708 = vpop.f32.mrf.mxu0
    %v709 = vadd.f32 %v589, %v708
    %v710 = vpop.f32.mrf.mxu0
    %v711 = vpop.f32.mrf.mxu0
    %712 = vdwg.mxu0
    %v713 = vmax.f32 %v709, -4.0
    %v714 = vmin.f32 %v713, 4.0
    %v715 = vmul.f32 %v714, 0.25
    %v716 = vmul.f32 %v715, 1.442695
    %v717 = vpow.pop %v716
    %718 = vst [vmem:[%s12] sm:$0xff] %v707
    %v719 = vmul.f32 %v717, %v717
    %720 = vst [vmem:[%s12 + $0x8] sm:$0xff] %v719
    %v721 = vmul.f32 %v717, %v222
    %v722 = vadd.f32 %v707, %v721
    %723 = vst [vmem:[%s12 + $0x10] sm:$0xff] %v722
    // Predicated region
    $region70: #{_forward_impl.1} parent=1 // pred_check
      _
    $region71: #{_forward_impl.1} parent=1 // pred_check_branch
      %725 = sbr.rel (0) target = $region73
    $region72: #{_forward_impl.1} parent=1 // pred_region
      _
    $region73: #{_forward_impl.1} parent=1 // pred_fallthru
      _
    // Predicated region
    $region74: #{_forward_impl.1} parent=1 // pred_check
      _
    $region75: #{_forward_impl.1} parent=1 // pred_check_branch
      %727 = sbr.rel (0) target = $region77
    $region76: #{_forward_impl.1} parent=1 // pred_region
      _
    $region77: #{_forward_impl.1} parent=1 // pred_fallthru
      _
    %728 = vsyncpa [#allocation3], 1
    %729 = vsyncpa [#allocation5], 1
    %730 = vsyncpa [#allocation8], 1

</llo_original>
